<compile_context>
chip_gen: v7x
topology: tpu7x:2x2x1
jax: 0.10.0
libtpu: 0.0.40
codegen_flags: <defaults>
</compile_context>

<pallas_src>
import functools

import jax
import jax.numpy as jnp
from jax import lax
from jax.experimental import pallas as pl
from jax.experimental.pallas import tpu as pltpu


# ----------------------------------------------------------------------------
# helpers
# ----------------------------------------------------------------------------
def _round_up(n, m):
    return (n + m - 1) // m * m


def _pad_last(x, target):
    pad = target - x.shape[-1]
    if pad == 0:
        return x
    widths = [(0, 0)] * (x.ndim - 1) + [(0, pad)]
    return jnp.pad(x, widths)


def _pick_block(n, preferred, align):
    """Largest divisor of n that is <= preferred and a multiple of align; fallback n
    (full-dim blocks are always layout-legal)."""
    if n <= preferred:
        return n
    best = None
    d = align
    while d <= preferred:
        if n % d == 0:
            best = d
        d += align
    return best if best is not None else n


def _choose_seq_tile(S, TB, H, itemsize, budget):
    """Pick a sequence tile TS (and possibly a padded S) so one hidden tile
    (TB, TS, H) stays under `budget` bytes and TS is 128-aligned (or == S)."""
    pref_rows = max(128, (budget // max(1, TB * H * itemsize)) // 128 * 128)
    if S <= pref_rows:
        return S, S                      # single full-length tile, no padding needed
    S_pad = _round_up(S, 128)            # pad only in the (rare) non-aligned long case
    best = 128
    d = 128
    while d <= pref_rows:
        if S_pad % d == 0:
            best = d
        d += 128
    return best, S_pad


def _vmem_capacity_bytes():
    try:
        return int(pltpu.get_tpu_info().vmem_capacity_bytes)
    except Exception:
        pass
    try:
        kind = jax.devices()[0].device_kind.lower()
    except Exception:
        return 64 << 20
    if "v2" in kind or "v3" in kind:
        return 16 << 20
    if "7" in kind:
        return 64 << 20                  # v7x: 64 MiB per TensorCore
    return 128 << 20                     # v4 / v5e / v5p / v6e


def _tiling_config():
    cap = _vmem_capacity_bytes()
    if cap >= (100 << 20):               # v5e / v6e / v4 / v5p: 128 MiB VMEM
        return 12 << 20, 80 << 20
    if cap >= (48 << 20):                # v7x: 64 MiB per TC
        return 6 << 20, 44 << 20
    return 2 << 20, None                 # older generations: stay within defaults


def _use_mxu_masked_sum(dtype):
    # v5e has no bf16 VPU, so a bf16 mask-mul would insert upcasts; route bf16 to the
    # MXU there.  Everywhere else (and for f32) the VPU multiply-accumulate avoids the
    # M=1 skinny-matmul fill/drain overhead on a DMA-bound kernel.
    if dtype != jnp.bfloat16:
        return False
    try:
        kind = jax.devices()[0].device_kind.lower()
    except Exception:
        return False
    return "v5" in kind


# ----------------------------------------------------------------------------
# Kernel 1a: masked mean pooling + DensePooler (+ optional L2 normalize)
#            tiled over (batch, seq); seq is the reduction axis (last, "arbitrary")
# ----------------------------------------------------------------------------
def _encode_mean_kernel(hidden_ref, mask_ref, w_ref, b_ref, out_ref,
                        acc_ref, cnt_ref, *, normalized, use_mxu_sum):
    j = pl.program_id(1)

    @pl.when(j == 0)
    def _():
        acc_ref[...] = jnp.zeros_like(acc_ref)
        cnt_ref[...] = jnp.zeros_like(cnt_ref)

    h = hidden_ref[...]                      # [TB, TS, H] native dtype (f32 / bf16)
    m = mask_ref[...]                        # [TB, TS]   same dtype as hidden
    if use_mxu_sum:
        # v5e + bf16: masked sum on the MXU, f32 accumulation.
        part = jnp.einsum("bs,bsh->bh", m, h,
                          preferred_element_type=jnp.float32)          # [TB, H] f32
    else:
        # VPU multiply-accumulate (f32 accumulation).
        part = jnp.sum(h * m[:, :, None], axis=1, dtype=jnp.float32)   # [TB, H] f32
    acc_ref[...] += part
    cnt_ref[...] += jnp.sum(m, axis=1, keepdims=True, dtype=jnp.float32)   # [TB, 1]

    @pl.when(j == pl.num_programs(1) - 1)
    def _():
        # NOTE: fully-masked rows divide by zero (NaN/Inf) exactly like the PyTorch code.
        reps = acc_ref[...] / cnt_ref[...]                             # [TB, H] f32
        reps = jnp.dot(reps.astype(w_ref.dtype), w_ref[...],
                       preferred_element_type=jnp.float32)
        reps = reps + b_ref[...]                                       # [TB, Dp] f32
        if normalized:
            ss = jnp.sum(reps * reps, axis=-1, keepdims=True)
            # F.normalize: x / max(||x||, 1e-12)  ==  x * rsqrt(max(||x||^2, 1e-24))
            reps = reps * lax.rsqrt(jnp.maximum(ss, 1e-24))
        out_ref[...] = reps.astype(out_ref.dtype)


def encode_mean(hidden, mask, w_pad, b_pad, *, normalized, tile_budget, vmem_limit,
                use_mxu_sum):
    """hidden [B,S,H], mask [B,S] (hidden dtype), w_pad [H,Dp], b_pad [1,Dp] f32
    -> [B,Dp] f32."""
    B, S, H = hidden.shape
    Dp = w_pad.shape[1]
    TB = _pick_block(B, 8, 8)
    TS, S_pad = _choose_seq_tile(S, TB, H, hidden.dtype.itemsize, tile_budget)
    if S_pad != S:
        # rare path: pad with zero-mask rows (no semantic change for mean pooling)
        hidden = jnp.pad(hidden, ((0, 0), (0, S_pad - S), (0, 0)))
        mask = jnp.pad(mask, ((0, 0), (0, S_pad - S)))
        S = S_pad
    nb, ns = B // TB, S // TS
    kernel = functools.partial(_encode_mean_kernel, normalized=normalized,
                               use_mxu_sum=use_mxu_sum)
    return pl.pallas_call(
        kernel,
        out_shape=jax.ShapeDtypeStruct((B, Dp), jnp.float32),
        grid=(nb, ns),
        in_specs=[
            pl.BlockSpec((TB, TS, H), lambda i, j: (i, j, 0)),
            pl.BlockSpec((TB, TS), lambda i, j: (i, j)),
            pl.BlockSpec((H, Dp), lambda i, j: (0, 0)),     # resident pooler weight
            pl.BlockSpec((1, Dp), lambda i, j: (0, 0)),     # resident pooler bias
        ],
        out_specs=pl.BlockSpec((TB, Dp), lambda i, j: (i, 0)),
        scratch_shapes=[
            pltpu.VMEM((TB, H), jnp.float32),               # masked-sum accumulator
            pltpu.VMEM((TB, 1), jnp.float32),               # mask count accumulator
        ],
        compiler_params=pltpu.CompilerParams(
            dimension_semantics=("parallel", "arbitrary"),
            vmem_limit_bytes=vmem_limit,
        ),
    )(hidden, mask, w_pad, b_pad)


# ----------------------------------------------------------------------------
# Kernel 1b: CLS pooling path — token 0 is sliced in the WRAPPER, so only [B,H]
#            ever reaches the kernel; DensePooler (+ optional L2 normalize).
# ----------------------------------------------------------------------------
def _project_kernel(x_ref, w_ref, b_ref, out_ref, *, normalized):
    reps = jnp.dot(x_ref[...], w_ref[...], preferred_element_type=jnp.float32)
    reps = reps + b_ref[...]
    if normalized:
        ss = jnp.sum(reps * reps, axis=-1, keepdims=True)
        reps = reps * lax.rsqrt(jnp.maximum(ss, 1e-24))
    out_ref[...] = reps.astype(out_ref.dtype)


def encode_cls(cls_tokens, w_pad, b_pad, *, normalized, vmem_limit):
    """cls_tokens [B,H], w_pad [H,Dp], b_pad [1,Dp] f32 -> [B,Dp] f32."""
    B, H = cls_tokens.shape
    Dp = w_pad.shape[1]
    # keep >=2 batch steps when possible so megacore 'parallel' sharding can engage
    pref = min(256, max(8, (B // 2) // 8 * 8))
    TB = _pick_block(B, pref, 8)
    kernel = functools.partial(_project_kernel, normalized=normalized)
    return pl.pallas_call(
        kernel,
        out_shape=jax.ShapeDtypeStruct((B, Dp), jnp.float32),
        grid=(B // TB,),
        in_specs=[
            pl.BlockSpec((TB, H), lambda i: (i, 0)),
            pl.BlockSpec((H, Dp), lambda i: (0, 0)),
            pl.BlockSpec((1, Dp), lambda i: (0, 0)),
        ],
        out_specs=pl.BlockSpec((TB, Dp), lambda i: (i, 0)),
        compiler_params=pltpu.CompilerParams(
            dimension_semantics=("parallel",),
            vmem_limit_bytes=vmem_limit,
        ),
    )(cls_tokens, w_pad, b_pad)


# ----------------------------------------------------------------------------
# Kernel 2: fused compute_similarity (/temperature) + HingeEmbeddingLoss
#   target (dense, pre-built in the wrapper) ; y = target*2-1 ; x = 1 - scores
#   loss_i = where(y != 1, max(0, margin - x), 0) + where(y != -1, x, 0); mean
#   Tiled over Bp (lane-padded to 128); SMEM scalar accumulates the partial sum.
# ----------------------------------------------------------------------------
def _sim_loss_kernel(q_ref, pt_ref, tgt_ref, scores_ref, loss_ref, acc_ref,
                     *, inv_temperature, margin, n_valid_cols, denom, tbp):
    j = pl.program_id(0)

    @pl.when(j == 0)
    def _():
        acc_ref[0] = jnp.float32(0.0)

    # p is pre-transposed ([Dp, Bp]) so the MXU contracts lhs dim 1 vs rhs dim 0.
    s = jnp.dot(q_ref[...], pt_ref[...], preferred_element_type=jnp.float32)
    s = s * inv_temperature
    scores_ref[...] = s

    y = tgt_ref[...] * 2.0 - 1.0
    x = 1.0 - s
    elem = (jnp.where(y != 1.0, jnp.maximum(margin - x, 0.0), jnp.zeros_like(x))
            + jnp.where(y != -1.0, x, jnp.zeros_like(x)))
    # mask out lane-padding columns (they would contribute 0 anyway for margin<=1,
    # but keep it robust)
    col = j * tbp + lax.broadcasted_iota(jnp.int32, elem.shape, 1)
    elem = jnp.where(col < n_valid_cols, elem, jnp.zeros_like(elem))

    acc_ref[0] += jnp.sum(elem)
    loss_ref[0, 0] = acc_ref[0] * (1.0 / denom)


def similarity_and_loss(q_reps_pad, p_reps_pad, target, *, temperature, margin=0.5,
                        vmem_limit=None):
    """q_reps_pad [Bq,Dp], p_reps_pad [Bp,Dp], target [Bq,Bp] -> (scores [Bq,Bp], loss)."""
    Bq, Dp = q_reps_pad.shape
    Bp = p_reps_pad.shape[0]
    Bp_pad = _round_up(Bp, 128)
    p_t = p_reps_pad.T                                  # [Dp, Bp]
    if Bp_pad != Bp:
        p_t = jnp.pad(p_t, ((0, 0), (0, Bp_pad - Bp)))
        target = jnp.pad(target, ((0, 0), (0, Bp_pad - Bp)))
    TBp = _pick_block(Bp_pad, 512, 128)
    nbp = Bp_pad // TBp

    kernel = functools.partial(_sim_loss_kernel,
                               inv_temperature=1.0 / temperature, margin=margin,
                               n_valid_cols=Bp, denom=float(Bq * Bp), tbp=TBp)
    scores_pad, loss = pl.pallas_call(
        kernel,
        out_shape=(
            jax.ShapeDtypeStruct((Bq, Bp_pad), jnp.float32),
            jax.ShapeDtypeStruct((1, 1), jnp.float32),
        ),
        grid=(nbp,),
        in_specs=[
            pl.BlockSpec((Bq, Dp), lambda j: (0, 0)),       # resident q block
            pl.BlockSpec((Dp, TBp), lambda j: (0, j)),
            pl.BlockSpec((Bq, TBp), lambda j: (0, j)),
        ],
        out_specs=(
            pl.BlockSpec((Bq, TBp), lambda j: (0, j)),
            pl.BlockSpec(memory_space=pltpu.MemorySpace.SMEM),
        ),
        scratch_shapes=[pltpu.SMEM((1,), jnp.float32)],
        compiler_params=pltpu.CompilerParams(
            dimension_semantics=("arbitrary",),
            vmem_limit_bytes=vmem_limit,
        ),
    )(q_reps_pad, p_t, target)
    return scores_pad[:, :Bp], loss[0, 0]


# ----------------------------------------------------------------------------
# Full forward (training path): returns (loss, scores, q_reps, p_reps)
# ----------------------------------------------------------------------------
def multi_bi_encoder_forward(q_hidden, q_mask, p_hidden, p_mask, teacher_score,
                             w_t, b, *, pooling_method="mean", normalized=True,
                             temperature=1.0):
    # TODO(synk): lm_q / lm_p HF transformer backbones and negatives_x_device
    #             all_gather are not re-implemented; last_hidden_state is taken as input.
    Bq, Sq, H = q_hidden.shape
    Bp, Sp, _ = p_hidden.shape
    D = w_t.shape[1]
    Dp = _round_up(D, 128)

    param_dtype = q_hidden.dtype
    # weight kept in the hidden dtype (bf16 backbone -> bf16 resident weight on v7x);
    # bias kept f32 (tiny) so the epilogue add happens in f32.
    w_pad = _pad_last(w_t, Dp).astype(param_dtype)                    # [H, Dp]
    b_pad = _pad_last(b.reshape(1, D).astype(jnp.float32), Dp)        # [1, Dp]

    tile_budget, vmem_limit = _tiling_config()
    use_mxu_sum = _use_mxu_masked_sum(param_dtype)

    # q and p are encoded SEPARATELY at their native sequence lengths — no full-tensor
    # pad/concat passes over HBM before the memory-bound pooling kernel.
    if pooling_method == "mean":
        q_reps_pad = encode_mean(q_hidden, q_mask.astype(param_dtype), w_pad, b_pad,
                                 normalized=normalized, tile_budget=tile_budget,
                                 vmem_limit=vmem_limit, use_mxu_sum=use_mxu_sum)
        p_reps_pad = encode_mean(p_hidden, p_mask.astype(param_dtype), w_pad, b_pad,
                                 normalized=normalized, tile_budget=tile_budget,
                                 vmem_limit=vmem_limit, use_mxu_sum=use_mxu_sum)
    elif pooling_method == "cls":
        # slice token 0 BEFORE any kernel call: CLS path never touches [B,S,H] again
        q_reps_pad = encode_cls(q_hidden[:, 0, :], w_pad, b_pad,
                                normalized=normalized, vmem_limit=vmem_limit)
        p_reps_pad = encode_cls(p_hidden[:, 0, :], w_pad, b_pad,
                                normalized=normalized, vmem_limit=vmem_limit)
    else:
        raise ValueError(pooling_method)

    # dense hinge target (Bq x Bp, tiny) built once outside the kernel:
    #   target[i, i*N + j] = teacher_score[i, j]
    n_group = teacher_score.shape[1]
    cols = jnp.arange(Bq)[:, None] * n_group + jnp.arange(n_group)[None, :]
    rows = jnp.broadcast_to(jnp.arange(Bq)[:, None], cols.shape)
    target = jnp.zeros((Bq, Bp), jnp.float32).at[rows, cols].set(
        teacher_score.astype(jnp.float32))

    # padded Dp columns are exactly zero, so they do not affect normalize or the dot.
    scores, loss = similarity_and_loss(q_reps_pad, p_reps_pad, target,
                                       temperature=temperature, vmem_limit=vmem_limit)
    return loss, scores, q_reps_pad[:, :D], p_reps_pad[:, :D]


# ----------------------------------------------------------------------------
# Pure-JAX reference (mirrors the PyTorch semantics) for a sanity check
# ----------------------------------------------------------------------------
def _reference(q_hidden, q_mask, p_hidden, p_mask, teacher, w_t, b,
               pooling_method="mean", normalized=True, temperature=1.0, margin=0.5):
    def enc(h, m):
        if pooling_method == "mean":
            mf = m.astype(jnp.float32)[:, :, None]
            reps = jnp.sum(h * mf, axis=1) / jnp.sum(mf, axis=1)
        else:
            reps = h[:, 0, :]
        reps = reps @ w_t + b
        if normalized:
            reps = reps / jnp.maximum(
                jnp.sqrt(jnp.sum(reps * reps, -1, keepdims=True)), 1e-12)
        return reps

    q = enc(q_hidden, q_mask)
    p = enc(p_hidden, p_mask)
    scores = (q @ p.T) / temperature
    Bq, N = teacher.shape
    target = jnp.zeros_like(scores)
    rows = jnp.repeat(jnp.arange(Bq), N)
    cols = (jnp.arange(Bq)[:, None] * N + jnp.arange(N)).reshape(-1)
    target = target.at[rows, cols].set(teacher.reshape(-1))
    y = target * 2 - 1
    x = 1 - scores
    elem = (jnp.where(y != 1.0, jnp.maximum(margin - x, 0.0), 0.0)
            + jnp.where(y != -1.0, x, 0.0))
    return jnp.mean(elem), scores, q, p


if __name__ == "__main__":
    key = jax.random.PRNGKey(0)
    B_q, n_group, S_q, S_p, H, D = 2, 4, 8, 16, 32, 32
    B_p = B_q * n_group
    temperature = 1.0

    k = jax.random.split(key, 6)
    q_hidden = jax.random.normal(k[0], (B_q, S_q, H), jnp.float32)
    p_hidden = jax.random.normal(k[1], (B_p, S_p, H), jnp.float32)
    q_mask = jnp.ones((B_q, S_q), jnp.int32)
    p_mask = (jax.random.uniform(k[2], (B_p, S_p)) > 0.3).astype(jnp.int32)
    p_mask = p_mask.at[:, 0].set(1)                     # guarantee non-empty mask
    teacher_score = jax.random.uniform(k[3], (B_q, n_group), jnp.float32)

    # DensePooler parameters (tied): nn.Linear(H, D) -> weight [D, H], bias [D]
    w = jax.random.normal(k[4], (D, H), jnp.float32) * 0.05
    b = jax.random.normal(k[5], (D,), jnp.float32) * 0.05
    w_t = w.T                                           # [H, D] for x @ W^T

    for pooling in ("mean", "cls"):
        loss, scores, q_reps, p_reps = multi_bi_encoder_forward(
            q_hidden, q_mask, p_hidden, p_mask, teacher_score, w_t, b,
            pooling_method=pooling, normalized=True, temperature=temperature)
        jax.block_until_ready((loss, scores, q_reps, p_reps))

        ref_loss, ref_scores, ref_q, ref_p = _reference(
            q_hidden, q_mask, p_hidden, p_mask, teacher_score, w_t, b,
            pooling_method=pooling, normalized=True, temperature=temperature)
        assert jnp.allclose(q_reps, ref_q, atol=1e-4), f"q_reps mismatch ({pooling})"
        assert jnp.allclose(p_reps, ref_p, atol=1e-4), f"p_reps mismatch ({pooling})"
        assert jnp.allclose(scores, ref_scores, atol=1e-4), f"scores mismatch ({pooling})"
        assert jnp.allclose(loss, ref_loss, atol=1e-4), f"loss mismatch ({pooling})"

    print("KERNEL_OK")
</pallas_src>

<mosaic_0001>
module attributes {stable_mosaic.version = 11 : i64} {
  func.func @_encode_mean_kernel(%arg0: i32, %arg1: i32, %arg2: memref<2x8x32xf32, #tpu.memory_space<vmem>>, %arg3: memref<2x8xf32, #tpu.memory_space<vmem>>, %arg4: memref<32x128xf32, #tpu.memory_space<vmem>>, %arg5: memref<1x128xf32, #tpu.memory_space<vmem>>, %arg6: memref<2x128xf32, #tpu.memory_space<vmem>>, %arg7: memref<2x32xf32, #tpu.memory_space<vmem>>, %arg8: memref<2x1xf32, #tpu.memory_space<vmem>>) attributes {dimension_semantics = [#tpu.dimension_semantics<parallel>, #tpu.dimension_semantics<arbitrary>], iteration_bounds = array<i64: 1, 1>, scalar_prefetch = 0 : i64, scratch_operands = 2 : i64, tpu.core_type = #tpu.core_type<tc>, window_params = [{transform_indices = @transform_0, window_bounds = array<i64: 2, 8, 32>}, {transform_indices = @transform_1, window_bounds = array<i64: 2, 8>}, {pipeline_mode = #tpu.pipeline_mode<synchronous>, transform_indices = @transform_2, window_bounds = array<i64: 32, 128>}, {pipeline_mode = #tpu.pipeline_mode<synchronous>, transform_indices = @transform_3, window_bounds = array<i64: 1, 128>}, {transform_indices = @transform_4, window_bounds = array<i64: 2, 128>}]} {
    %c0_i32 = arith.constant 0 : i32
    %0 = arith.cmpi eq, %arg1, %c0_i32 : i32
    %1 = arith.extui %0 : i1 to i32
    %c0_i32_0 = arith.constant 0 : i32
    %2 = arith.cmpi ne, %1, %c0_i32_0 : i32
    scf.if %2 {
      %cst_16 = arith.constant 0.000000e+00 : f32
      %20 = vector.broadcast %cst_16 : f32 to vector<2x32xf32>
      %c0_17 = arith.constant 0 : index
      %c0_18 = arith.constant 0 : index
      %21 = vector.load %arg7[%c0_17, %c0_18] : memref<2x32xf32, #tpu.memory_space<vmem>>, vector<2x32xf32>
      tpu.vector_store %arg7[%c0_17, %c0_18], %20 {strides = array<i32>} : memref<2x32xf32, #tpu.memory_space<vmem>>, vector<2x32xf32>,
      %cst_19 = arith.constant 0.000000e+00 : f32
      %22 = vector.broadcast %cst_19 : f32 to vector<2x1xf32>
      %c0_20 = arith.constant 0 : index
      %c0_21 = arith.constant 0 : index
      %23 = vector.load %arg8[%c0_20, %c0_21] : memref<2x1xf32, #tpu.memory_space<vmem>>, vector<2x1xf32>
      tpu.vector_store %arg8[%c0_20, %c0_21], %22 {strides = array<i32>} : memref<2x1xf32, #tpu.memory_space<vmem>>, vector<2x1xf32>,
    } else {
    }
    %c0 = arith.constant 0 : index
    %c0_1 = arith.constant 0 : index
    %c0_2 = arith.constant 0 : index
    %3 = vector.load %arg2[%c0, %c0_1, %c0_2] : memref<2x8x32xf32, #tpu.memory_space<vmem>>, vector<2x8x32xf32>
    %c0_3 = arith.constant 0 : index
    %c0_4 = arith.constant 0 : index
    %4 = vector.load %arg3[%c0_3, %c0_4] : memref<2x8xf32, #tpu.memory_space<vmem>>, vector<2x8xf32>
    %5 = vector.shape_cast %4 : vector<2x8xf32> to vector<2x8x1xf32>
    %6 = vector.broadcast %5 : vector<2x8x1xf32> to vector<2x8x32xf32>
    %7 = arith.mulf %3, %6 : vector<2x8x32xf32>
    %cst = arith.constant dense<0.000000e+00> : vector<2x32xf32>
    %8 = vector.multi_reduction <add>, %7, %cst [1] : vector<2x8x32xf32> to vector<2x32xf32>
    %c0_5 = arith.constant 0 : index
    %c0_6 = arith.constant 0 : index
    %9 = vector.load %arg7[%c0_5, %c0_6] : memref<2x32xf32, #tpu.memory_space<vmem>>, vector<2x32xf32>
    %10 = arith.addf %9, %8 : vector<2x32xf32>
    %c0_7 = arith.constant 0 : index
    %c0_8 = arith.constant 0 : index
    %11 = vector.load %arg7[%c0_7, %c0_8] : memref<2x32xf32, #tpu.memory_space<vmem>>, vector<2x32xf32>
    tpu.vector_store %arg7[%c0_7, %c0_8], %10 {strides = array<i32>} : memref<2x32xf32, #tpu.memory_space<vmem>>, vector<2x32xf32>,
    %c0_9 = arith.constant 0 : index
    %c0_10 = arith.constant 0 : index
    %12 = vector.load %arg8[%c0_9, %c0_10] : memref<2x1xf32, #tpu.memory_space<vmem>>, vector<2x1xf32>
    %cst_11 = arith.constant dense<0.000000e+00> : vector<2xf32>
    %13 = vector.multi_reduction <add>, %4, %cst_11 [1] : vector<2x8xf32> to vector<2xf32>
    %14 = vector.shape_cast %13 : vector<2xf32> to vector<2x1xf32>
    %15 = arith.addf %12, %14 : vector<2x1xf32>
    %c0_12 = arith.constant 0 : index
    %c0_13 = arith.constant 0 : index
    %16 = vector.load %arg8[%c0_12, %c0_13] : memref<2x1xf32, #tpu.memory_space<vmem>>, vector<2x1xf32>
    tpu.vector_store %arg8[%c0_12, %c0_13], %15 {strides = array<i32>} : memref<2x1xf32, #tpu.memory_space<vmem>>, vector<2x1xf32>,
    %c0_i32_14 = arith.constant 0 : i32
    %17 = arith.cmpi eq, %arg1, %c0_i32_14 : i32
    %18 = arith.extui %17 : i1 to i32
    %c0_i32_15 = arith.constant 0 : i32
    %19 = arith.cmpi ne, %18, %c0_i32_15 : i32
    scf.if %19 {
      %c0_16 = arith.constant 0 : index
      %c0_17 = arith.constant 0 : index
      %20 = vector.load %arg7[%c0_16, %c0_17] : memref<2x32xf32, #tpu.memory_space<vmem>>, vector<2x32xf32>
      %c0_18 = arith.constant 0 : index
      %c0_19 = arith.constant 0 : index
      %21 = vector.load %arg8[%c0_18, %c0_19] : memref<2x1xf32, #tpu.memory_space<vmem>>, vector<2x1xf32>
      %22 = vector.broadcast %21 : vector<2x1xf32> to vector<2x32xf32>
      %23 = arith.divf %20, %22 : vector<2x32xf32>
      %c0_20 = arith.constant 0 : index
      %c0_21 = arith.constant 0 : index
      %24 = vector.load %arg4[%c0_20, %c0_21] : memref<32x128xf32, #tpu.memory_space<vmem>>, vector<32x128xf32>
      %cst_22 = arith.constant dense<0.000000e+00> : vector<2x128xf32>
      %25 = tpu.matmul %23, %24, %cst_22 {dimension_numbers = #tpu.dot_dimension_numbers<[1], [0], [0], [1], [0, 0, 1, 1], [], []>} : vector<2x32xf32>, vector<32x128xf32>, vector<2x128xf32> -> vector<2x128xf32>
      %c0_23 = arith.constant 0 : index
      %c0_24 = arith.constant 0 : index
      %26 = vector.load %arg5[%c0_23, %c0_24] : memref<1x128xf32, #tpu.memory_space<vmem>>, vector<1x128xf32>
      %27 = vector.broadcast %26 : vector<1x128xf32> to vector<2x128xf32>
      %28 = arith.addf %25, %27 : vector<2x128xf32>
      %29 = arith.mulf %28, %28 : vector<2x128xf32>
      %cst_25 = arith.constant dense<0.000000e+00> : vector<2xf32>
      %30 = vector.multi_reduction <add>, %29, %cst_25 [1] : vector<2x128xf32> to vector<2xf32>
      %31 = vector.shape_cast %30 : vector<2xf32> to vector<2x1xf32>
      %cst_26 = arith.constant 1.000000e-24 : f32
      %32 = vector.broadcast %cst_26 : f32 to vector<2x1xf32>
      %33 = arith.maximumf %31, %32 : vector<2x1xf32>
      %34 = math.rsqrt %33 : vector<2x1xf32>
      %35 = vector.broadcast %34 : vector<2x1xf32> to vector<2x128xf32>
      %36 = arith.mulf %28, %35 : vector<2x128xf32>
      %c0_27 = arith.constant 0 : index
      %c0_28 = arith.constant 0 : index
      %37 = vector.load %arg6[%c0_27, %c0_28] : memref<2x128xf32, #tpu.memory_space<vmem>>, vector<2x128xf32>
      tpu.vector_store %arg6[%c0_27, %c0_28], %36 {strides = array<i32>} : memref<2x128xf32, #tpu.memory_space<vmem>>, vector<2x128xf32>,
    } else {
    }
    return
  }
  func.func @transform_0(%arg0: i32, %arg1: i32) -> (i32, i32, i32) {
    %c0_i32 = arith.constant 0 : i32
    %c0_i32_0 = arith.constant 0 : i32
    return %arg0, %arg1, %c0_i32 : i32, i32, i32
  }
  func.func @transform_1(%arg0: i32, %arg1: i32) -> (i32, i32) {
    %c0_i32 = arith.constant 0 : i32
    return %arg0, %arg1 : i32, i32
  }
  func.func @transform_2(%arg0: i32, %arg1: i32) -> (i32, i32) {
    %c0_i32 = arith.constant 0 : i32
    %c0_i32_0 = arith.constant 0 : i32
    %c0_i32_1 = arith.constant 0 : i32
    return %c0_i32, %c0_i32_0 : i32, i32
  }
  func.func @transform_3(%arg0: i32, %arg1: i32) -> (i32, i32) {
    %c0_i32 = arith.constant 0 : i32
    %c0_i32_0 = arith.constant 0 : i32
    %c0_i32_1 = arith.constant 0 : i32
    return %c0_i32, %c0_i32_0 : i32, i32
  }
  func.func @transform_4(%arg0: i32, %arg1: i32) -> (i32, i32) {
    %c0_i32 = arith.constant 0 : i32
    %c0_i32_0 = arith.constant 0 : i32
    return %arg0, %c0_i32 : i32, i32
  }
}

</mosaic_0001>

<llo_original>
// kernel: tpu_custom_call.1
$region0: #{tpu_custom_call.1}
  #allocation0 [shape = 'u32[]', space=smem, size = 0x4, offset = 0x4, fixed_abs, tag = 'smem constant byte address 0x4 - core index']
  #allocation1 [shape = 'u32[144,128]{1,0:T(1,128)}', space=vmem, size = 0x12000, scoped, tag = 'internal scratch']
  #allocation2 [shape = 'f32[2,32]{1,0:T(2,128)}', space=vmem, size = 0x400, scoped, tag = 'scratch operand']
  #allocation3 [shape = 'f32[2,1]{1,0:T(2,128)}', space=vmem, size = 0x400, scoped, tag = 'scratch operand']
  %s0 = inlined_call_operand.hbm [shape: f32[2,8,32], index: 0, kind: input, shape index: {}]
  %s1 = inlined_call_operand.hbm [shape: f32[2,8], index: 1, kind: input, shape index: {}]
  %s2 = inlined_call_operand.hbm [shape: f32[32,128], index: 2, kind: input, shape index: {}]
  %s3 = inlined_call_operand.hbm [shape: f32[1,128], index: 3, kind: input, shape index: {}]
  %s4 = inlined_call_operand.hbm [shape: f32[2,128], index: 4, kind: output, shape index: {}]
  %s5 = sld [smem:[#allocation0]]
  $region50: #{tpu_custom_call.1} parent=0
    _
  %s7 = ssub.s32 1, %s5
  %s8 = scalar_select 0, %s7, %s5
  $region1: #{tpu_custom_call.1} parent=0
    #allocation4 [shape = 'u8[8192]{0}', space=vmem, size = 0x2000, scoped, tag = 'input window, operand 0, single buffered']
    #allocation5 [shape = 's32[1]{0}', space=sflag, size = 0x4, scoped, tag = 'scoped memory for tpu_custom_call.1']
    #allocation6 [shape = 's32[1]{0}', space=sflag, size = 0x4, scoped, tag = 'scoped memory for tpu_custom_call.1']
    #allocation7 [shape = 'u8[1024]{0}', space=vmem, size = 0x400, scoped, tag = 'input window, operand 1, single buffered']
    #allocation8 [shape = 's32[1]{0}', space=sflag, size = 0x4, scoped, tag = 'scoped memory for tpu_custom_call.1']
    #allocation9 [shape = 'u8[16384]{0}', space=vmem, size = 0x4000, scoped, tag = 'input window, operand 2, single buffered']
    #allocation10 [shape = 'u8[512]{0}', space=vmem, size = 0x400, scoped, tag = 'input window, operand 3, single buffered']
    #allocation11 [shape = 's32[1]{0}', space=sflag, size = 0x4, scoped, tag = 'scoped memory for tpu_custom_call.1']
    #allocation12 [shape = 'u8[1024]{0}', space=vmem, size = 0x400, scoped, tag = 'output window, operand 0, single buffered']
    %9 = vsyncpa [#allocation5], 0
    %10 = vsyncpa [#allocation8], 0
    %11 = vsyncpa [#allocation11], 0
    %12 = vsyncpa [#allocation6], 0
    // Predicated region
    $region2: #{tpu_custom_call.1} parent=1 // pred_check
      _
    $region3: #{tpu_custom_call.1} parent=1 // pred_check_branch
      %14 = sbr.rel (0) target = $region5
    $region4: #{tpu_custom_call.1} parent=1 // pred_region
      %s16 = ssub.s32 256, 256
      %17 = vsyncadd [#allocation5], %s16
      %s18 = sshll.u32 [#allocation4], 4
      %s19 = int_to_ptr.vmem [resolvable:$true] %s18
      %24 = dma.hbm_to_vmem [thread:$0]  %s0, 256, %s19, [#allocation5], 128, 128, 8
    $region5: #{tpu_custom_call.1} parent=1 // pred_fallthru
      _
    // Predicated region
    $region6: #{tpu_custom_call.1} parent=1 // pred_check
      _
    $region7: #{tpu_custom_call.1} parent=1 // pred_check_branch
      %26 = sbr.rel (0) target = $region9
    $region8: #{tpu_custom_call.1} parent=1 // pred_region
      %s28 = ssub.s32 32, 32
      %29 = vsyncadd [#allocation8], %s28
      %s31 = sshll.u32 [#allocation7], 4
      %s32 = int_to_ptr.vmem [resolvable:$true] %s31
      %34 = dma.hbm_to_vmem [thread:$0]  %s1, 32, %s32, [#allocation8]
    $region9: #{tpu_custom_call.1} parent=1 // pred_fallthru
      _
    // Predicated region
    $region10: #{tpu_custom_call.1} parent=1 // pred_check
      _
    $region11: #{tpu_custom_call.1} parent=1 // pred_check_branch
      %36 = sbr.rel (0) target = $region13
    $region12: #{tpu_custom_call.1} parent=1 // pred_region
      %s38 = ssub.s32 512, 512
      %39 = vsyncadd [#allocation8], %s38
      %s40 = sshll.u32 [#allocation9], 4
      %s41 = int_to_ptr.vmem [resolvable:$true] %s40
      %46 = dma.hbm_to_vmem [thread:$0]  %s2, 512, %s41, [#allocation8], 128, 128, 8
    $region13: #{tpu_custom_call.1} parent=1 // pred_fallthru
      _
    // Predicated region
    $region14: #{tpu_custom_call.1} parent=1 // pred_check
      _
    $region15: #{tpu_custom_call.1} parent=1 // pred_check_branch
      %48 = sbr.rel (0) target = $region17
    $region16: #{tpu_custom_call.1} parent=1 // pred_region
      %s50 = ssub.s32 16, 16
      %51 = vsyncadd [#allocation11], %s50
      %s53 = sshll.u32 [#allocation10], 4
      %s54 = int_to_ptr.vmem [resolvable:$true] %s53
      %56 = dma.hbm_to_vmem [thread:$0]  %s3, 16, %s54, [#allocation11]
    $region17: #{tpu_custom_call.1} parent=1 // pred_fallthru
      _
    // Predicated region
    $region18: #{tpu_custom_call.1} parent=1 // pred_check
      _
    $region19: #{tpu_custom_call.1} parent=1 // pred_check_branch
      %58 = sbr.rel (0) target = $region21
    $region20: #{tpu_custom_call.1} parent=1 // pred_region
      %59 = dma.done [#allocation5], 256
    $region21: #{tpu_custom_call.1} parent=1 // pred_fallthru
      _
    // Predicated region
    $region22: #{tpu_custom_call.1} parent=1 // pred_check
      _
    $region23: #{tpu_custom_call.1} parent=1 // pred_check_branch
      %61 = sbr.rel (0) target = $region25
    $region24: #{tpu_custom_call.1} parent=1 // pred_region
      %62 = dma.done [#allocation8], 32
    $region25: #{tpu_custom_call.1} parent=1 // pred_fallthru
      _
    // Predicated region
    $region26: #{tpu_custom_call.1} parent=1 // pred_check
      _
    $region27: #{tpu_custom_call.1} parent=1 // pred_check_branch
      %64 = sbr.rel (0) target = $region29
    $region28: #{tpu_custom_call.1} parent=1 // pred_region
      %65 = dma.done [#allocation8], 512
    $region29: #{tpu_custom_call.1} parent=1 // pred_fallthru
      _
    // Predicated region
    $region30: #{tpu_custom_call.1} parent=1 // pred_check
      _
    $region31: #{tpu_custom_call.1} parent=1 // pred_check_branch
      %67 = sbr.rel (0) target = $region33
    $region32: #{tpu_custom_call.1} parent=1 // pred_region
      %68 = dma.done [#allocation11], 16
    $region33: #{tpu_custom_call.1} parent=1 // pred_fallthru
      _
    %p69 = scmp.eq.s32.totalorder 0, 0
    // Predicated region
    $region34: #{tpu_custom_call.1} parent=1 // pred_check
      %p70 = pneg %p69
    $region35: #{tpu_custom_call.1} parent=1 // pred_check_branch
      %72 = sbr.rel (%p70) target = $region37
    $region36: #{tpu_custom_call.1} parent=1 // pred_region
      %vm73 = vcmask 254976
      %74 = vst.msk [vmem:[#allocation2] sm:$0x3] %vm73, 0.0
      %vm75 = vcmask 1024
      %76 = vst.msk [vmem:[#allocation3] sm:$0x3] %vm75, 0.0
    $region37: #{tpu_custom_call.1} parent=1 // pred_fallthru
      _
    %v77 = vld [vmem:[#allocation4] sm:$0xff]
    %v78 = vld [vmem:[#allocation4 + $0x8] sm:$0xff]
    %v79 = vld [vmem:[#allocation7] sm:$0x3]
    %v80 = vlaneseq
    %v81 = vshrl.u32 %v80, 7
    %v82 = vsub.s32 0, %v81
    %v83 = vrot.slane %v79, %v82
    %85 = vbcast.lane.b32.xlu0 %v83, 256
    %v86 = vpop.permute.xlu0 %85
    %v87 = vlaneseq
    %v88 = vshrl.u32 %v87, 7
    %v89 = vsub.s32 1, %v88
    %v90 = vrot.slane %v79, %v89
    %92 = vbcast.lane.b32.xlu0 %v90, 256
    %v93 = vpop.permute.xlu0 %92
    %v94 = vmul.f32 %v77, %v86
    %v95 = vmul.f32 %v78, %v93
    %vm96 = vcmask 261120
    %v97 = vsel %vm96, %v94, 0.0
    %v98 = vrot.slane %v97, 4
    %v99 = vadd.f32 %v97, %v98
    %v100 = vrot.slane %v99, 2
    %v101 = vadd.f32 %v99, %v100
    %v102 = vrot.slane %v101, 1
    %v103 = vadd.f32 %v101, %v102
    %v104 = vsel %vm96, %v95, 0.0
    %v105 = vrot.slane %v104, 4
    %v106 = vadd.f32 %v104, %v105
    %v107 = vrot.slane %v106, 2
    %v108 = vadd.f32 %v106, %v107
    %v109 = vrot.slane %v108, 1
    %v110 = vadd.f32 %v108, %v109
    %v111 = vld [vmem:[#allocation2] sm:$0x3]
    %vm114 = vcmask 1041409
    %v115 = vsel %vm114, %v110, %v103
    %v117 = vadd.f32 %v111, %v115
    %vm118 = vcmask 254976
    %119 = vst.msk [vmem:[#allocation2] sm:$0x3] %vm118, %v117
    %v120 = vld [vmem:[#allocation3] sm:$0x3]
    %vm121 = vcmask 58368
    %v122 = vsel %vm121, %v79, 0.0
    %123 = vadd.xlane.f32.xlu0 %v122
    %v124 = vpop.xlane.xlu0 %123
    %v125 = vadd.f32 %v120, %v124
    %vm126 = vcmask 1024
    %127 = vst.msk [vmem:[#allocation3] sm:$0x3] %vm126, %v125
    // Predicated region
    $region38: #{tpu_custom_call.1} parent=1 // pred_check
      %p128 = pneg %p69
    $region39: #{tpu_custom_call.1} parent=1 // pred_check_branch
      %130 = sbr.rel (%p128) target = $region41
    $region40: #{tpu_custom_call.1} parent=1 // pred_region
      %v131 = vld [vmem:[#allocation2] sm:$0x3]
      %v132 = vld [vmem:[#allocation3] sm:$0x3]
      %134 = vset.pattern.permute.xlu0 0
      %135 = vperm.xlu0 %134, %v132
      %v136 = vpop.permute.xlu0 %135
      %v138 = vrcp.pop %v136
      %v139 = vmul.f32 %v131, %v138
      %v140 = vld [vmem:[#allocation9] sm:$0xff]
      %v141 = vld [vmem:[#allocation9 + $0x8] sm:$0xff]
      %v142 = vld [vmem:[#allocation9 + $0x10] sm:$0xff]
      %v143 = vld [vmem:[#allocation9 + $0x18] sm:$0xff]
      %v144 = vld [vmem:[#allocation10] sm:$0x1]
      %v146 = vlaneseq
      %v147 = vshrl.u32 %v146, 7
      %v148 = vsub.s32 0, %v147
      %v149 = vrot.slane %v144, %v148
      %v152 = vsel %vm96, %v139, 0
      %154 = vmatprep.subr.mxu0 0.0
      %155 = vmatpush1.msra.mxu0 %v140
      %156 = vmatprep.subr.mxu0 0.0
      %157 = vmatpush1.msra.mxu0 %v141
      %158 = vmatprep.subr.mxu0 0.0
      %159 = vmatpush1.msra.mxu0 %v142
      %160 = vmatprep.subr.mxu0 0.0
      %161 = vmatpush1.msra.mxu0 %v143
      %162 = vmatprep.subr.mxu0 0.0
      %163 = vmatpush1.msra.mxu0 0.0
      %164 = vmatprep.subr.mxu0 0.0
      %165 = vmatpush1.msra.mxu0 0.0
      %166 = vmatprep.subr.mxu0 0.0
      %167 = vmatpush1.msra.mxu0 0.0
      %168 = vmatprep.subr.mxu0 0.0
      %169 = vmatpush1.msra.mxu0 0.0
      %170 = vmatprep.subr.mxu0 0.0
      %171 = vmatpush1.msra.mxu0 0.0
      %172 = vmatprep.subr.mxu0 0.0
      %173 = vmatpush1.msra.mxu0 0.0
      %174 = vmatprep.subr.mxu0 0.0
      %175 = vmatpush1.msra.mxu0 0.0
      %176 = vmatprep.subr.mxu0 0.0
      %177 = vmatpush1.msra.mxu0 0.0
      %178 = vmatprep.subr.mxu0 0.0
      %179 = vmatpush1.msra.mxu0 0.0
      %180 = vmatprep.subr.mxu0 0.0
      %181 = vmatpush1.msra.mxu0 0.0
      %182 = vmatprep.subr.mxu0 0.0
      %183 = vmatpush1.msra.mxu0 0.0
      %184 = vmatprep.subr.mxu0 0.0
      %185 = vmatpush1.msra.mxu0 0.0
      %186 = vmatprep.subr.mxu0 0.0
      %187 = vmatpush1.msra.mxu0 0.0
      %188 = vmatprep.subr.mxu0 0.0
      %189 = vmatpush1.msra.mxu0 0.0
      %190 = vmatprep.subr.mxu0 0.0
      %191 = vmatpush1.msra.mxu0 0.0
      %192 = vmatprep.subr.mxu0 0.0
      %193 = vmatpush1.msra.mxu0 0.0
      %194 = vmatprep.subr.mxu0 0.0
      %195 = vmatpush1.msra.mxu0 0.0
      %196 = vmatprep.subr.mxu0 0.0
      %197 = vmatpush1.msra.mxu0 0.0
      %198 = vmatprep.subr.mxu0 0.0
      %199 = vmatpush1.msra.mxu0 0.0
      %200 = vmatprep.subr.mxu0 0.0
      %201 = vmatpush1.msra.mxu0 0.0
      %202 = vmatprep.subr.mxu0 0.0
      %203 = vmatpush1.msra.mxu0 0.0
      %204 = vmatprep.subr.mxu0 0.0
      %205 = vmatpush1.msra.mxu0 0.0
      %206 = vmatprep.subr.mxu0 0.0
      %207 = vmatpush1.msra.mxu0 0.0
      %208 = vmatprep.subr.mxu0 0.0
      %209 = vmatpush1.msra.mxu0 0.0
      %210 = vmatprep.subr.mxu0 0.0
      %211 = vmatpush1.msra.mxu0 0.0
      %212 = vmatprep.subr.mxu0 0.0
      %213 = vmatpush1.msra.mxu0 0.0
      %214 = vmatprep.subr.mxu0 0.0
      %215 = vmatpush1.msra.mxu0 0.0
      %216 = vmatprep.subr.mxu0 0.0
      %217 = vmatpush1.msra.mxu0 0.0
      %218 = vmatprep.mubr.f32.mxu0 0.0
      %219 = vmatmul.mubr.f32.gmra.mrb[0].mxu0 %v152
      %v220 = vpop.f32.mrb[0].mxu0
      %v221 = vadd.f32 %v149, %v220
      %v222 = vpop.f32.mrb[0].mxu0
      %223 = vdwg.mxu0
      %v224 = vmul.f32 %v221, %v221
      %vm225 = vcmask 1041408
      %v226 = vsel %vm225, %v224, 0.0
      %227 = vadd.xlane.f32.xlu0 %v226
      %v228 = vpop.xlane.xlu0 %227
      %v229 = vmax.f32 %v228, 1e-24
      %v230 = vrsqrt.pop %v229
      %v231 = vmul.f32 %v221, %v230
      %232 = vst [vmem:[#allocation12] sm:$0x3] %v231
    $region41: #{tpu_custom_call.1} parent=1 // pred_fallthru
      _
    // Predicated region
    $region42: #{tpu_custom_call.1} parent=1 // pred_check
      _
    $region43: #{tpu_custom_call.1} parent=1 // pred_check_branch
      %234 = sbr.rel (0) target = $region45
    $region44: #{tpu_custom_call.1} parent=1 // pred_region
      %s236 = ssub.s32 32, 32
      %237 = vsyncadd [#allocation6], %s236
      %s239 = sshll.u32 [#allocation12], 4
      %s240 = int_to_ptr.vmem [resolvable:$true] %s239
      %242 = dma.vmem_to_hbm [thread:$0]  %s240, 32, %s4, [#allocation6]
    $region45: #{tpu_custom_call.1} parent=1 // pred_fallthru
      _
    // Predicated region
    $region46: #{tpu_custom_call.1} parent=1 // pred_check
      _
    $region47: #{tpu_custom_call.1} parent=1 // pred_check_branch
      %244 = sbr.rel (0) target = $region49
    $region48: #{tpu_custom_call.1} parent=1 // pred_region
      %245 = dma.done [#allocation6], 32
    $region49: #{tpu_custom_call.1} parent=1 // pred_fallthru
      _
    %246 = vsyncpa [#allocation5], 1
    %247 = vsyncpa [#allocation8], 1
    %248 = vsyncpa [#allocation11], 1
    %249 = vsyncpa [#allocation6], 1

</llo_original>
